<compile_context>
chip_gen: v6e
topology: v6e:2x2x1
jax: 0.10.0
libtpu: 0.0.40
codegen_flags: <defaults>
</compile_context>

<pallas_src>
import functools

import jax
import jax.numpy as jnp
from jax.experimental import pallas as pl
from jax.experimental.pallas import tpu as pltpu


def _detection_loss_kernel(pred_ref, grid_ref, out_ref, *,
                           C, BB, TN, HW, B,
                           box_weight, pos_weight, class_mask, has_tail):
    ib = pl.program_id(0)          # batch-block index
    it = pl.program_id(1)          # spatial-tile index
    R = BB * C

    @pl.when(jnp.logical_and(ib == 0, it == 0))
    def _zero():
        out_ref[...] = jnp.zeros_like(out_ref)

    x = pred_ref[...].astype(jnp.float32)        # (R, TN) logits
    y = grid_ref[...].astype(jnp.float32)        # (R, TN) targets

    if has_tail:
        # Sanitize out-of-range rows (tail batch block) / lanes (tail spatial tile)
        # BEFORE any arithmetic, so NaN/Inf garbage can never reach the matmuls / sums.
        lane = jax.lax.broadcasted_iota(jnp.int32, (1, TN), 1)
        lane_ok = (it * TN + lane) < HW                                # (1, TN)
        rrow = jax.lax.broadcasted_iota(jnp.int32, (R, 1), 0)
        row_ok = rrow < (B - ib * BB) * C                              # (R, 1)
        ok_full = jnp.logical_and(lane_ok, row_ok)                     # (R, TN)
        x = jnp.where(ok_full, x, 0.0)
        y = jnp.where(ok_full, y, 0.0)

    # Dense, numerically-stable elementwise math over the fully packed (R, TN) slab.
    e = jnp.exp(-jnp.abs(x))
    sp = jnp.maximum(-x, 0.0) + jnp.log1p(e)        # softplus(-x), stable
    bce0 = (1.0 - y) * x + sp                       # BCE-with-logits at pos_weight == 1
    t = y * sp                                      # pos_weight correction term
    sig = jnp.exp(-sp)                              # sigmoid(x) via EUP, no reciprocal
    d = sig - y
    ad = jnp.abs(d)
    hub = jnp.where(ad < 1.0, 0.5 * d * d, ad - 0.5)   # Huber, delta = 1

    # Tiny iota-built selector matrices; the per-group row selection / bbox-row sum
    # runs on the (otherwise idle) MXU, keeping the packed slab free of sublane slices.
    g_i = jax.lax.broadcasted_iota(jnp.int32, (BB, R), 0)
    r_i = jax.lax.broadcasted_iota(jnp.int32, (BB, R), 1)
    base = g_i * C
    sel_obj = (r_i == base).astype(jnp.float32)                               # row g*C
    sel_cls = (r_i == base + (C - 1)).astype(jnp.float32)                     # row g*C+5
    sel_hub = jnp.logical_and(r_i > base, r_i < base + 5).astype(jnp.float32)  # rows +1..+4

    dot = functools.partial(jnp.dot, preferred_element_type=jnp.float32)
    y_obj = dot(sel_obj, y)          # (BB, TN) objectness target
    bce_obj = dot(sel_obj, bce0)     # (BB, TN)
    t_obj = dot(sel_obj, t)
    bce_cls = dot(sel_cls, bce0)
    t_cls = dot(sel_cls, t)
    hub_g = dot(sel_hub, hub)        # (BB, TN) per-group sum over the 4 bbox rows

    bin_g = bce_obj + (box_weight - 1.0) * t_obj     # BCEWithLogits(pos_weight=box_weight)
    cls_g = bce_cls + (pos_weight - 1.0) * t_cls     # BCEWithLogits(pos_weight=pos_weight)

    pos = y_obj > 0.0                                # (BB, TN); False on sanitized tails
    posf = pos.astype(jnp.float32)

    if has_tail:
        gidx = jax.lax.broadcasted_iota(jnp.int32, (BB, 1), 0)
        valid_g = jnp.logical_and(lane_ok, (ib * BB + gidx) < B)       # (BB, TN)
        bin_s = jnp.sum(jnp.where(valid_g, bin_g, 0.0))
        cls_unmasked = jnp.where(valid_g, cls_g, 0.0)
    else:
        bin_s = jnp.sum(bin_g)
        cls_unmasked = cls_g

    npos_s = jnp.sum(posf)
    bbox_s = jnp.sum(jnp.where(pos, hub_g, 0.0))
    if class_mask:
        cls_s = jnp.sum(jnp.where(pos, cls_g, 0.0))
    else:
        cls_s = jnp.sum(cls_unmasked)

    # Accumulate the four partial sums into lanes 0..3 of the resident output block.
    olane = jax.lax.broadcasted_iota(jnp.int32, out_ref.shape, 1)
    upd = (jnp.where(olane == 0, bin_s, 0.0)
           + jnp.where(olane == 1, npos_s, 0.0)
           + jnp.where(olane == 2, bbox_s, 0.0)
           + jnp.where(olane == 3, cls_s, 0.0))
    out_ref[...] += upd


def detection_loss(pred_grid, grid, *, box_weight=10.0, pos_weight=1.0,
                   loss_weights=(1.0, 1.0, 1.0), class_mask=True,
                   max_block_elems=64 * 1024):
    """pred_grid, grid: NCHW (f32 or bf16), C == 6 (1 obj + 4 bbox + 1 class)."""
    B, C, H, W = pred_grid.shape
    assert C == 6, "DetectionLoss kernel assumes 1 obj + 4 bbox + 1 class channel"
    HW = H * W

    # Reshape-only views (no data movement for contiguous NCHW); upcast inside kernel.
    pred2 = pred_grid.reshape(B * C, HW)
    grid2 = grid.reshape(B * C, HW)

    # ---- tile selection: large per-step DMA + legal (8, 128)-compatible block ----
    # BB batches per block (BB == B, or a multiple of 4 so BB*C % 8 == 0),
    # TN spatial positions per block (TN == HW, or a multiple of 128),
    # with BB*TN <= max_block_elems (~1.5 MiB/f32 per input block).
    bb_target = max(1, max_block_elems // max(HW, 1))
    if bb_target >= B or B <= 4:
        BB = B
    else:
        BB = max(4, min((bb_target // 4) * 4, (B // 4) * 4))
    tn_budget = max(128, max_block_elems // BB)
    if HW <= tn_budget:
        TN = HW
    else:
        TN = (tn_budget // 128) * 128
    R = BB * C
    assert TN == HW or TN % 128 == 0
    assert R == B * C or R % 8 == 0
    NB = pl.cdiv(B, BB)
    NT = pl.cdiv(HW, TN)
    has_tail = (B % BB != 0) or (HW % TN != 0)

    # Explicit VMEM budget: 2 inputs x 2 pipeline buffers + elementwise f32 temporaries.
    esize = jnp.dtype(pred_grid.dtype).itemsize
    vmem_est = 4 * R * TN * esize + 14 * R * TN * 4 + (1 << 20)
    vmem_limit = int(min(64 * 1024 * 1024, max(32 * 1024 * 1024, vmem_est)))

    kernel = functools.partial(
        _detection_loss_kernel,
        C=C, BB=BB, TN=TN, HW=HW, B=B,
        box_weight=float(box_weight), pos_weight=float(pos_weight),
        class_mask=bool(class_mask), has_tail=bool(has_tail),
    )

    partials = pl.pallas_call(
        kernel,
        out_shape=jax.ShapeDtypeStruct((8, 128), jnp.float32),
        grid_spec=pltpu.PrefetchScalarGridSpec(
            num_scalar_prefetch=0,
            grid=(NB, NT),
            in_specs=[
                pl.BlockSpec((R, TN), lambda ib, it: (ib, it)),
                pl.BlockSpec((R, TN), lambda ib, it: (ib, it)),
            ],
            out_specs=pl.BlockSpec((8, 128), lambda ib, it: (0, 0)),
        ),
        compiler_params=pltpu.CompilerParams(
            dimension_semantics=("arbitrary", "arbitrary"),
            vmem_limit_bytes=vmem_limit),
    )(pred2, grid2)

    # Finalize in JAX: divide the four partial sums and combine with the loss weights.
    sums = partials[0, 0:4]                       # [bin_sum, npos, bbox_sum, cls_sum]
    total = float(B * HW)
    bin_loss = sums[0] / total
    npos = sums[1]
    bbox_loss = sums[2] / (4.0 * npos)            # NaN if npos == 0, as in PyTorch
    class_loss = sums[3] / (npos if class_mask else total)
    w0, w1, w2 = (float(loss_weights[0]), float(loss_weights[1]), float(loss_weights[2]))
    return w0 * bin_loss + w1 * bbox_loss + w2 * class_loss


def _reference_loss(pred, targ, box_weight, pos_weight, weights):
    """Pure-JAX reference mirroring the PyTorch module (class_mask=True)."""
    x0, y0 = pred[:, 0], targ[:, 0]
    sp0 = jnp.maximum(-x0, 0.0) + jnp.log1p(jnp.exp(-jnp.abs(x0)))
    bin_loss = jnp.mean((1.0 - y0) * x0 + (1.0 + (box_weight - 1.0) * y0) * sp0)

    maskf = (y0 > 0.0).astype(jnp.float32)[:, None]       # (B,1,H,W)
    npos = jnp.sum(maskf)

    sb = jax.nn.sigmoid(pred[:, 1:5])
    d = sb - targ[:, 1:5]
    ad = jnp.abs(d)
    hub = jnp.where(ad < 1.0, 0.5 * d * d, ad - 0.5)
    bbox_loss = jnp.sum(hub * maskf) / (4.0 * npos)

    xc, yc = pred[:, 5], targ[:, 5]
    spc = jnp.maximum(-xc, 0.0) + jnp.log1p(jnp.exp(-jnp.abs(xc)))
    ce = (1.0 - yc) * xc + (1.0 + (pos_weight - 1.0) * yc) * spc
    class_loss = jnp.sum(ce * maskf[:, 0]) / npos

    return (weights[0] * bin_loss + weights[1] * bbox_loss + weights[2] * class_loss)


if __name__ == "__main__":
    key = jax.random.PRNGKey(0)
    k_pred, k_obj, k_box, k_cls = jax.random.split(key, 4)

    B, C, H, W = 2, 6, 16, 16

    # Predictions: raw logits / raw bbox regressions.
    pred = jax.random.normal(k_pred, (B, C, H, W), dtype=jnp.float32)

    # Targets: objectness in {0,1} (guaranteed positives), bbox in [0,1], class in {0,1}.
    obj = (jax.random.uniform(k_obj, (B, 1, H, W)) < 0.3).astype(jnp.float32)
    obj = obj.at[:, :, 0, 0].set(1.0)   # ensure at least one positive per batch
    bbox = jax.random.uniform(k_box, (B, 4, H, W), dtype=jnp.float32)
    cls = (jax.random.uniform(k_cls, (B, 1, H, W)) < 0.5).astype(jnp.float32)
    targ = jnp.concatenate([obj, bbox, cls], axis=1)

    loss = detection_loss(pred, targ,
                          box_weight=10.0, pos_weight=1.0,
                          loss_weights=(1.0, 1.0, 1.0))
    loss = jax.block_until_ready(loss)
    assert loss.shape == () and jnp.isfinite(loss)

    ref = jax.block_until_ready(
        _reference_loss(pred, targ, 10.0, 1.0, (1.0, 1.0, 1.0)))
    assert jnp.allclose(loss, ref, rtol=1e-3, atol=1e-5), (loss, ref)

    print("KERNEL_OK")
</pallas_src>

<mosaic_0001>
module attributes {stable_mosaic.version = 11 : i64} {
  func.func @_detection_loss_kernel(%arg0: i32, %arg1: i32, %arg2: memref<12x256xf32, #tpu.memory_space<vmem>>, %arg3: memref<12x256xf32, #tpu.memory_space<vmem>>, %arg4: memref<8x128xf32, #tpu.memory_space<vmem>>) attributes {dimension_semantics = [#tpu.dimension_semantics<arbitrary>, #tpu.dimension_semantics<arbitrary>], iteration_bounds = array<i64: 1, 1>, scalar_prefetch = 0 : i64, scratch_operands = 0 : i64, tpu.core_type = #tpu.core_type<tc>, window_params = [{transform_indices = @transform_0, window_bounds = array<i64: 12, 256>}, {transform_indices = @transform_1, window_bounds = array<i64: 12, 256>}, {pipeline_mode = #tpu.pipeline_mode<synchronous>, transform_indices = @transform_2, window_bounds = array<i64: 8, 128>}]} {
    %c0_i32 = arith.constant 0 : i32
    %0 = arith.cmpi eq, %arg0, %c0_i32 : i32
    %c0_i32_0 = arith.constant 0 : i32
    %1 = arith.cmpi eq, %arg1, %c0_i32_0 : i32
    %2 = arith.andi %0, %1 : i1
    %3 = arith.extui %2 : i1 to i32
    %c0_i32_1 = arith.constant 0 : i32
    %4 = arith.cmpi ne, %3, %c0_i32_1 : i32
    scf.if %4 {
      %cst_37 = arith.constant 0.000000e+00 : f32
      %117 = vector.broadcast %cst_37 : f32 to vector<8x128xf32>
      %c0_38 = arith.constant 0 : index
      %c0_39 = arith.constant 0 : index
      %118 = vector.load %arg4[%c0_38, %c0_39] : memref<8x128xf32, #tpu.memory_space<vmem>>, vector<8x128xf32>
      tpu.vector_store %arg4[%c0_38, %c0_39], %117 {strides = array<i32>} : memref<8x128xf32, #tpu.memory_space<vmem>>, vector<8x128xf32>,
    } else {
    }
    %c0 = arith.constant 0 : index
    %c0_2 = arith.constant 0 : index
    %5 = vector.load %arg2[%c0, %c0_2] : memref<12x256xf32, #tpu.memory_space<vmem>>, vector<12x256xf32>
    %c0_3 = arith.constant 0 : index
    %c0_4 = arith.constant 0 : index
    %6 = vector.load %arg3[%c0_3, %c0_4] : memref<12x256xf32, #tpu.memory_space<vmem>>, vector<12x256xf32>
    %7 = math.absf %5 : vector<12x256xf32>
    %cst = arith.constant 0.000000e+00 : f32
    %8 = vector.broadcast %cst : f32 to vector<12x256xf32>
    %9 = arith.subf %8, %7 : vector<12x256xf32>
    %10 = math.exp %9 : vector<12x256xf32>
    %cst_5 = arith.constant 0.000000e+00 : f32
    %11 = vector.broadcast %cst_5 : f32 to vector<12x256xf32>
    %12 = arith.subf %11, %5 : vector<12x256xf32>
    %cst_6 = arith.constant 0.000000e+00 : f32
    %13 = vector.broadcast %cst_6 : f32 to vector<12x256xf32>
    %14 = arith.maximumf %12, %13 : vector<12x256xf32>
    %15 = math.log1p %10 : vector<12x256xf32>
    %16 = arith.addf %14, %15 : vector<12x256xf32>
    %cst_7 = arith.constant 1.000000e+00 : f32
    %17 = vector.broadcast %cst_7 : f32 to vector<12x256xf32>
    %18 = arith.subf %17, %6 : vector<12x256xf32>
    %19 = arith.mulf %18, %5 : vector<12x256xf32>
    %20 = arith.addf %19, %16 : vector<12x256xf32>
    %21 = arith.mulf %6, %16 : vector<12x256xf32>
    %cst_8 = arith.constant 0.000000e+00 : f32
    %22 = vector.broadcast %cst_8 : f32 to vector<12x256xf32>
    %23 = arith.subf %22, %16 : vector<12x256xf32>
    %24 = math.exp %23 : vector<12x256xf32>
    %25 = arith.subf %24, %6 : vector<12x256xf32>
    %26 = math.absf %25 : vector<12x256xf32>
    %cst_9 = arith.constant 1.000000e+00 : f32
    %27 = vector.broadcast %cst_9 : f32 to vector<12x256xf32>
    %28 = arith.cmpf olt, %26, %27 : vector<12x256xf32>
    %cst_10 = arith.constant 5.000000e-01 : f32
    %29 = vector.broadcast %cst_10 : f32 to vector<12x256xf32>
    %30 = arith.mulf %29, %25 : vector<12x256xf32>
    %31 = arith.mulf %30, %25 : vector<12x256xf32>
    %cst_11 = arith.constant 5.000000e-01 : f32
    %32 = vector.broadcast %cst_11 : f32 to vector<12x256xf32>
    %33 = arith.subf %26, %32 : vector<12x256xf32>
    %34 = arith.select %28, %31, %33 : vector<12x256xi1>, vector<12x256xf32>
    %35 = tpu.iota {dimensions = array<i32: 0>} : vector<2x12xi32>
    %36 = tpu.iota {dimensions = array<i32: 1>} : vector<2x12xi32>
    %c6_i32 = arith.constant 6 : i32
    %37 = vector.broadcast %c6_i32 : i32 to vector<2x12xi32>
    %38 = arith.muli %35, %37 : vector<2x12xi32>
    %39 = arith.cmpi eq, %36, %38 : vector<2x12xi32>
    %40 = arith.extui %39 : vector<2x12xi1> to vector<2x12xi32>
    %41 = arith.sitofp %40 : vector<2x12xi32> to vector<2x12xf32>
    %c5_i32 = arith.constant 5 : i32
    %42 = vector.broadcast %c5_i32 : i32 to vector<2x12xi32>
    %43 = arith.addi %38, %42 : vector<2x12xi32>
    %44 = arith.cmpi eq, %36, %43 : vector<2x12xi32>
    %45 = arith.extui %44 : vector<2x12xi1> to vector<2x12xi32>
    %46 = arith.sitofp %45 : vector<2x12xi32> to vector<2x12xf32>
    %47 = arith.cmpi sgt, %36, %38 : vector<2x12xi32>
    %c5_i32_12 = arith.constant 5 : i32
    %48 = vector.broadcast %c5_i32_12 : i32 to vector<2x12xi32>
    %49 = arith.addi %38, %48 : vector<2x12xi32>
    %50 = arith.cmpi slt, %36, %49 : vector<2x12xi32>
    %51 = arith.andi %47, %50 : vector<2x12xi1>
    %52 = arith.extui %51 : vector<2x12xi1> to vector<2x12xi32>
    %53 = arith.sitofp %52 : vector<2x12xi32> to vector<2x12xf32>
    %cst_13 = arith.constant dense<0.000000e+00> : vector<2x256xf32>
    %54 = tpu.matmul %41, %6, %cst_13 {dimension_numbers = #tpu.dot_dimension_numbers<[1], [0], [0], [1], [0, 0, 1, 1], [], []>} : vector<2x12xf32>, vector<12x256xf32>, vector<2x256xf32> -> vector<2x256xf32>
    %cst_14 = arith.constant dense<0.000000e+00> : vector<2x256xf32>
    %55 = tpu.matmul %41, %20, %cst_14 {dimension_numbers = #tpu.dot_dimension_numbers<[1], [0], [0], [1], [0, 0, 1, 1], [], []>} : vector<2x12xf32>, vector<12x256xf32>, vector<2x256xf32> -> vector<2x256xf32>
    %cst_15 = arith.constant dense<0.000000e+00> : vector<2x256xf32>
    %56 = tpu.matmul %41, %21, %cst_15 {dimension_numbers = #tpu.dot_dimension_numbers<[1], [0], [0], [1], [0, 0, 1, 1], [], []>} : vector<2x12xf32>, vector<12x256xf32>, vector<2x256xf32> -> vector<2x256xf32>
    %cst_16 = arith.constant dense<0.000000e+00> : vector<2x256xf32>
    %57 = tpu.matmul %46, %20, %cst_16 {dimension_numbers = #tpu.dot_dimension_numbers<[1], [0], [0], [1], [0, 0, 1, 1], [], []>} : vector<2x12xf32>, vector<12x256xf32>, vector<2x256xf32> -> vector<2x256xf32>
    %cst_17 = arith.constant dense<0.000000e+00> : vector<2x256xf32>
    %58 = tpu.matmul %46, %21, %cst_17 {dimension_numbers = #tpu.dot_dimension_numbers<[1], [0], [0], [1], [0, 0, 1, 1], [], []>} : vector<2x12xf32>, vector<12x256xf32>, vector<2x256xf32> -> vector<2x256xf32>
    %cst_18 = arith.constant dense<0.000000e+00> : vector<2x256xf32>
    %59 = tpu.matmul %53, %34, %cst_18 {dimension_numbers = #tpu.dot_dimension_numbers<[1], [0], [0], [1], [0, 0, 1, 1], [], []>} : vector<2x12xf32>, vector<12x256xf32>, vector<2x256xf32> -> vector<2x256xf32>
    %cst_19 = arith.constant 9.000000e+00 : f32
    %60 = vector.broadcast %cst_19 : f32 to vector<2x256xf32>
    %61 = arith.mulf %60, %56 : vector<2x256xf32>
    %62 = arith.addf %55, %61 : vector<2x256xf32>
    %cst_20 = arith.constant 0.000000e+00 : f32
    %63 = vector.broadcast %cst_20 : f32 to vector<2x256xf32>
    %64 = arith.mulf %63, %58 : vector<2x256xf32>
    %65 = arith.addf %57, %64 : vector<2x256xf32>
    %cst_21 = arith.constant 0.000000e+00 : f32
    %66 = vector.broadcast %cst_21 : f32 to vector<2x256xf32>
    %67 = arith.cmpf ogt, %54, %66 : vector<2x256xf32>
    %68 = arith.extui %67 : vector<2x256xi1> to vector<2x256xi32>
    %69 = arith.sitofp %68 : vector<2x256xi32> to vector<2x256xf32>
    %70 = vector.shape_cast %62 : vector<2x256xf32> to vector<1x2x256xf32>
    %cst_22 = arith.constant dense<0.000000e+00> : vector<1xf32>
    %71 = vector.multi_reduction <add>, %70, %cst_22 [1, 2] : vector<1x2x256xf32> to vector<1xf32>
    %72 = vector.shape_cast %71 : vector<1xf32> to vector<1x1x1xf32>
    %73 = vector.extract %72[0, 0, 0] : f32 from vector<1x1x1xf32>
    %74 = vector.shape_cast %69 : vector<2x256xf32> to vector<1x2x256xf32>
    %cst_23 = arith.constant dense<0.000000e+00> : vector<1xf32>
    %75 = vector.multi_reduction <add>, %74, %cst_23 [1, 2] : vector<1x2x256xf32> to vector<1xf32>
    %76 = vector.shape_cast %75 : vector<1xf32> to vector<1x1x1xf32>
    %77 = vector.extract %76[0, 0, 0] : f32 from vector<1x1x1xf32>
    %cst_24 = arith.constant 0.000000e+00 : f32
    %78 = vector.broadcast %cst_24 : f32 to vector<2x256xf32>
    %79 = arith.select %67, %59, %78 : vector<2x256xi1>, vector<2x256xf32>
    %80 = vector.shape_cast %79 : vector<2x256xf32> to vector<1x2x256xf32>
    %cst_25 = arith.constant dense<0.000000e+00> : vector<1xf32>
    %81 = vector.multi_reduction <add>, %80, %cst_25 [1, 2] : vector<1x2x256xf32> to vector<1xf32>
    %82 = vector.shape_cast %81 : vector<1xf32> to vector<1x1x1xf32>
    %83 = vector.extract %82[0, 0, 0] : f32 from vector<1x1x1xf32>
    %cst_26 = arith.constant 0.000000e+00 : f32
    %84 = vector.broadcast %cst_26 : f32 to vector<2x256xf32>
    %85 = arith.select %67, %65, %84 : vector<2x256xi1>, vector<2x256xf32>
    %86 = vector.shape_cast %85 : vector<2x256xf32> to vector<1x2x256xf32>
    %cst_27 = arith.constant dense<0.000000e+00> : vector<1xf32>
    %87 = vector.multi_reduction <add>, %86, %cst_27 [1, 2] : vector<1x2x256xf32> to vector<1xf32>
    %88 = vector.shape_cast %87 : vector<1xf32> to vector<1x1x1xf32>
    %89 = vector.extract %88[0, 0, 0] : f32 from vector<1x1x1xf32>
    %90 = tpu.iota {dimensions = array<i32: 1>} : vector<8x128xi32>
    %c0_i32_28 = arith.constant 0 : i32
    %91 = vector.broadcast %c0_i32_28 : i32 to vector<8x128xi32>
    %92 = arith.cmpi eq, %90, %91 : vector<8x128xi32>
    %cst_29 = arith.constant 0.000000e+00 : f32
    %93 = vector.broadcast %73 : f32 to vector<8x128xf32>
    %94 = vector.broadcast %cst_29 : f32 to vector<8x128xf32>
    %95 = arith.select %92, %93, %94 : vector<8x128xi1>, vector<8x128xf32>
    %c1_i32 = arith.constant 1 : i32
    %96 = vector.broadcast %c1_i32 : i32 to vector<8x128xi32>
    %97 = arith.cmpi eq, %90, %96 : vector<8x128xi32>
    %cst_30 = arith.constant 0.000000e+00 : f32
    %98 = vector.broadcast %77 : f32 to vector<8x128xf32>
    %99 = vector.broadcast %cst_30 : f32 to vector<8x128xf32>
    %100 = arith.select %97, %98, %99 : vector<8x128xi1>, vector<8x128xf32>
    %101 = arith.addf %95, %100 : vector<8x128xf32>
    %c2_i32 = arith.constant 2 : i32
    %102 = vector.broadcast %c2_i32 : i32 to vector<8x128xi32>
    %103 = arith.cmpi eq, %90, %102 : vector<8x128xi32>
    %cst_31 = arith.constant 0.000000e+00 : f32
    %104 = vector.broadcast %83 : f32 to vector<8x128xf32>
    %105 = vector.broadcast %cst_31 : f32 to vector<8x128xf32>
    %106 = arith.select %103, %104, %105 : vector<8x128xi1>, vector<8x128xf32>
    %107 = arith.addf %101, %106 : vector<8x128xf32>
    %c3_i32 = arith.constant 3 : i32
    %108 = vector.broadcast %c3_i32 : i32 to vector<8x128xi32>
    %109 = arith.cmpi eq, %90, %108 : vector<8x128xi32>
    %cst_32 = arith.constant 0.000000e+00 : f32
    %110 = vector.broadcast %89 : f32 to vector<8x128xf32>
    %111 = vector.broadcast %cst_32 : f32 to vector<8x128xf32>
    %112 = arith.select %109, %110, %111 : vector<8x128xi1>, vector<8x128xf32>
    %113 = arith.addf %107, %112 : vector<8x128xf32>
    %c0_33 = arith.constant 0 : index
    %c0_34 = arith.constant 0 : index
    %114 = vector.load %arg4[%c0_33, %c0_34] : memref<8x128xf32, #tpu.memory_space<vmem>>, vector<8x128xf32>
    %115 = arith.addf %114, %113 : vector<8x128xf32>
    %c0_35 = arith.constant 0 : index
    %c0_36 = arith.constant 0 : index
    %116 = vector.load %arg4[%c0_35, %c0_36] : memref<8x128xf32, #tpu.memory_space<vmem>>, vector<8x128xf32>
    tpu.vector_store %arg4[%c0_35, %c0_36], %115 {strides = array<i32>} : memref<8x128xf32, #tpu.memory_space<vmem>>, vector<8x128xf32>,
    return
  }
  func.func @transform_0(%arg0: i32, %arg1: i32) -> (i32, i32) {
    %c0_i32 = arith.constant 0 : i32
    return %arg0, %arg1 : i32, i32
  }
  func.func @transform_1(%arg0: i32, %arg1: i32) -> (i32, i32) {
    %c0_i32 = arith.constant 0 : i32
    return %arg0, %arg1 : i32, i32
  }
  func.func @transform_2(%arg0: i32, %arg1: i32) -> (i32, i32) {
    %c0_i32 = arith.constant 0 : i32
    %c0_i32_0 = arith.constant 0 : i32
    %c0_i32_1 = arith.constant 0 : i32
    return %c0_i32, %c0_i32_0 : i32, i32
  }
}

</mosaic_0001>

<llo_original>
// kernel: tpu_custom_call.1
$region0: #{tpu_custom_call.1}
  #allocation0 [shape = 'u32[]', space=smem, size = 0x4, offset = 0x4, fixed_abs, tag = 'smem constant byte address 0x4 - core index']
  #allocation1 [shape = 'u32[144,128]{1,0:T(1,128)}', space=vmem, size = 0x12000, scoped, tag = 'internal scratch']
  %s0 = inlined_call_operand.hbm [shape: f32[12,256], index: 0, kind: input, shape index: {}]
  %s1 = inlined_call_operand.hbm [shape: f32[12,256], index: 1, kind: input, shape index: {}]
  %s2 = inlined_call_operand.hbm [shape: f32[8,128], index: 2, kind: output, shape index: {}]
  %s3 = sld [smem:[#allocation0]]
  $region30: #{tpu_custom_call.1} parent=0
    _
  %s5 = ssub.s32 1, %s3
  %s6 = scalar_select 0, %s5, %s3
  $region1: #{tpu_custom_call.1} parent=0
    #allocation2 [shape = 'u8[16384]{0}', space=vmem, size = 0x4000, scoped, tag = 'input window, operand 0, single buffered']
    #allocation3 [shape = 's32[1]{0}', space=sflag, size = 0x4, scoped, tag = 'scoped memory for tpu_custom_call.1']
    #allocation4 [shape = 's32[1]{0}', space=sflag, size = 0x4, scoped, tag = 'scoped memory for tpu_custom_call.1']
    #allocation5 [shape = 'u8[16384]{0}', space=vmem, size = 0x4000, scoped, tag = 'input window, operand 1, single buffered']
    #allocation6 [shape = 's32[1]{0}', space=sflag, size = 0x4, scoped, tag = 'scoped memory for tpu_custom_call.1']
    #allocation7 [shape = 'u8[4096]{0}', space=vmem, size = 0x1000, scoped, tag = 'output window, operand 0, single buffered']
    %7 = vsyncpa [#allocation3], 0
    %8 = vsyncpa [#allocation6], 0
    %9 = vsyncpa [#allocation4], 0
    // Predicated region
    $region2: #{tpu_custom_call.1} parent=1 // pred_check
      _
    $region3: #{tpu_custom_call.1} parent=1 // pred_check_branch
      %11 = sbr.rel (0) target = $region5
    $region4: #{tpu_custom_call.1} parent=1 // pred_region
      %s13 = ssub.s32 512, 512
      %14 = vsyncadd [#allocation3], %s13
      %s15 = sshll.u32 [#allocation2], 4
      %s16 = int_to_ptr.vmem [resolvable:$true] %s15
      %21 = dma.hbm_to_vmem [thread:$0]  %s0, 512, %s16, [#allocation3], 256, 256, 16
    $region5: #{tpu_custom_call.1} parent=1 // pred_fallthru
      _
    // Predicated region
    $region6: #{tpu_custom_call.1} parent=1 // pred_check
      _
    $region7: #{tpu_custom_call.1} parent=1 // pred_check_branch
      %23 = sbr.rel (0) target = $region9
    $region8: #{tpu_custom_call.1} parent=1 // pred_region
      %s25 = ssub.s32 512, 512
      %26 = vsyncadd [#allocation6], %s25
      %s27 = sshll.u32 [#allocation5], 4
      %s28 = int_to_ptr.vmem [resolvable:$true] %s27
      %33 = dma.hbm_to_vmem [thread:$0]  %s1, 512, %s28, [#allocation6], 256, 256, 16
    $region9: #{tpu_custom_call.1} parent=1 // pred_fallthru
      _
    // Predicated region
    $region10: #{tpu_custom_call.1} parent=1 // pred_check
      _
    $region11: #{tpu_custom_call.1} parent=1 // pred_check_branch
      %35 = sbr.rel (0) target = $region13
    $region12: #{tpu_custom_call.1} parent=1 // pred_region
      %36 = dma.done [#allocation3], 512
    $region13: #{tpu_custom_call.1} parent=1 // pred_fallthru
      _
    // Predicated region
    $region14: #{tpu_custom_call.1} parent=1 // pred_check
      _
    $region15: #{tpu_custom_call.1} parent=1 // pred_check_branch
      %38 = sbr.rel (0) target = $region17
    $region16: #{tpu_custom_call.1} parent=1 // pred_region
      %39 = dma.done [#allocation6], 512
    $region17: #{tpu_custom_call.1} parent=1 // pred_fallthru
      _
    %p40 = scmp.eq.s32.totalorder 0, 0
    %p41 = scmp.eq.s32.totalorder 0, 0
    %p42 = pnand %p40, %p41
    %p43 = pneg %p42
    // Predicated region
    $region18: #{tpu_custom_call.1} parent=1 // pred_check
      _
    $region19: #{tpu_custom_call.1} parent=1 // pred_check_branch
      %45 = sbr.rel (%p42) target = $region21
    $region20: #{tpu_custom_call.1} parent=1 // pred_region
      %46 = vst [vmem:[#allocation7] sm:$0xff] 0.0
    $region21: #{tpu_custom_call.1} parent=1 // pred_fallthru
      _
    %v47 = vld [vmem:[#allocation2] sm:$0xff]
    %v48 = vld [vmem:[#allocation2 + $0x8] sm:$0xff]
    %v49 = vld [vmem:[#allocation2 + $0x10] sm:$0xf]
    %v50 = vld [vmem:[#allocation2 + $0x18] sm:$0xf]
    %v51 = vld [vmem:[#allocation5] sm:$0xff]
    %v52 = vld [vmem:[#allocation5 + $0x8] sm:$0xff]
    %v53 = vld [vmem:[#allocation5 + $0x10] sm:$0xf]
    %v54 = vld [vmem:[#allocation5 + $0x18] sm:$0xf]
    %v55 = vand.u32 2147483647, %v47
    %v56 = vand.u32 2147483647, %v48
    %v57 = vand.u32 2147483647, %v49
    %v58 = vand.u32 2147483647, %v50
    %v59 = vsub.f32 0.0, %v55
    %v60 = vsub.f32 0.0, %v56
    %v61 = vsub.f32 0.0, %v57
    %v62 = vsub.f32 0.0, %v58
    %v63 = vmul.f32 %v59, 1.442695
    %v64 = vpow.pop %v63
    %v65 = vmul.f32 %v60, 1.442695
    %v66 = vpow.pop %v65
    %v67 = vmul.f32 %v61, 1.442695
    %v68 = vpow.pop %v67
    %v69 = vmul.f32 %v62, 1.442695
    %v70 = vpow.pop %v69
    %v71 = vsub.f32 0.0, %v47
    %v72 = vsub.f32 0.0, %v48
    %v73 = vsub.f32 0.0, %v49
    %v74 = vsub.f32 0.0, %v50
    %v75 = vmax.f32 %v71, 0.0
    %v76 = vmax.f32 %v72, 0.0
    %v77 = vmax.f32 %v73, 0.0
    %v78 = vmax.f32 %v74, 0.0
    %v79 = vadd.f32 %v64, 1.0
    %v80 = vlog2.pop %v79
    %v81 = vmul.f32 %v80, 0.6931472
    %v82 = vmul.f32 -0.5, %v64
    %v83 = vadd.f32 %v82, 1.0
    %v84 = vmul.f32 %v83, %v64
    %v85 = vand.u32 2147483647, %v64
    %vm86 = vcmp.lt.f32.partialorder %v85, 0.0004427343
    %v87 = vsel %vm86, %v84, %v81
    %v88 = vadd.f32 %v66, 1.0
    %v89 = vlog2.pop %v88
    %v90 = vmul.f32 %v89, 0.6931472
    %v91 = vmul.f32 -0.5, %v66
    %v92 = vadd.f32 %v91, 1.0
    %v93 = vmul.f32 %v92, %v66
    %v94 = vand.u32 2147483647, %v66
    %vm95 = vcmp.lt.f32.partialorder %v94, 0.0004427343
    %v96 = vsel %vm95, %v93, %v90
    %v97 = vadd.f32 %v68, 1.0
    %v98 = vlog2.pop %v97
    %v99 = vmul.f32 %v98, 0.6931472
    %v100 = vmul.f32 -0.5, %v68
    %v101 = vadd.f32 %v100, 1.0
    %v102 = vmul.f32 %v101, %v68
    %v103 = vand.u32 2147483647, %v68
    %vm104 = vcmp.lt.f32.partialorder %v103, 0.0004427343
    %v105 = vsel %vm104, %v102, %v99
    %v106 = vadd.f32 %v70, 1.0
    %v107 = vlog2.pop %v106
    %v108 = vmul.f32 %v107, 0.6931472
    %v109 = vmul.f32 -0.5, %v70
    %v110 = vadd.f32 %v109, 1.0
    %v111 = vmul.f32 %v110, %v70
    %v112 = vand.u32 2147483647, %v70
    %vm113 = vcmp.lt.f32.partialorder %v112, 0.0004427343
    %v114 = vsel %vm113, %v111, %v108
    %v115 = vadd.f32 %v75, %v87
    %v116 = vadd.f32 %v76, %v96
    %v117 = vadd.f32 %v77, %v105
    %v118 = vadd.f32 %v78, %v114
    %v119 = vsub.f32 1.0, %v51
    %v120 = vsub.f32 1.0, %v52
    %v121 = vsub.f32 1.0, %v53
    %v122 = vsub.f32 1.0, %v54
    %v123 = vmul.f32 %v119, %v47
    %v124 = vmul.f32 %v120, %v48
    %v125 = vmul.f32 %v121, %v49
    %v126 = vmul.f32 %v122, %v50
    %v127 = vadd.f32 %v123, %v115
    %v128 = vadd.f32 %v124, %v116
    %v129 = vadd.f32 %v125, %v117
    %v130 = vadd.f32 %v126, %v118
    %v131 = vmul.f32 %v51, %v115
    %v132 = vmul.f32 %v52, %v116
    %v133 = vmul.f32 %v53, %v117
    %v134 = vmul.f32 %v54, %v118
    %v135 = vsub.f32 0.0, %v115
    %v136 = vsub.f32 0.0, %v116
    %v137 = vsub.f32 0.0, %v117
    %v138 = vsub.f32 0.0, %v118
    %v139 = vmul.f32 %v135, 1.442695
    %v140 = vpow.pop %v139
    %v141 = vmul.f32 %v136, 1.442695
    %v142 = vpow.pop %v141
    %v143 = vmul.f32 %v137, 1.442695
    %v144 = vpow.pop %v143
    %v145 = vmul.f32 %v138, 1.442695
    %v146 = vpow.pop %v145
    %v147 = vsub.f32 %v140, %v51
    %v148 = vsub.f32 %v142, %v52
    %v149 = vsub.f32 %v144, %v53
    %v150 = vsub.f32 %v146, %v54
    %v151 = vand.u32 2147483647, %v147
    %v152 = vand.u32 2147483647, %v148
    %v153 = vand.u32 2147483647, %v149
    %v154 = vand.u32 2147483647, %v150
    %vm155 = vcmp.lt.f32.partialorder %v151, 1.0
    %vm156 = vcmp.lt.f32.partialorder %v152, 1.0
    %vm157 = vcmp.lt.f32.partialorder %v153, 1.0
    %vm158 = vcmp.lt.f32.partialorder %v154, 1.0
    %v159 = vmul.f32 %v147, 0.5
    %v160 = vmul.f32 %v148, 0.5
    %v161 = vmul.f32 %v149, 0.5
    %v162 = vmul.f32 %v150, 0.5
    %v163 = vmul.f32 %v159, %v147
    %v164 = vmul.f32 %v160, %v148
    %v165 = vmul.f32 %v161, %v149
    %v166 = vmul.f32 %v162, %v150
    %v167 = vsub.f32 %v151, 0.5
    %v168 = vsub.f32 %v152, 0.5
    %v169 = vsub.f32 %v153, 0.5
    %v170 = vsub.f32 %v154, 0.5
    %v171 = vsel %vm155, %v163, %v167
    %v172 = vsel %vm156, %v164, %v168
    %v173 = vsel %vm157, %v165, %v169
    %v174 = vsel %vm158, %v166, %v170
    %v175 = vlaneseq
    %v176 = vshrl.u32 %v175, 7
    %v177 = vlaneseq
    %v178 = vand.u32 %v177, 127
    %v179 = vmul.u32 %v176, 6
    %vm180 = vcmp.eq.s32.totalorder %v178, %v179
    %v181 = vsel %vm180, 1, 0
    %v182 = vcvt.s32.f32 %v181
    %v183 = vadd.s32 %v179, 5
    %vm184 = vcmp.eq.s32.totalorder %v178, %v183
    %v185 = vsel %vm184, 1, 0
    %v186 = vcvt.s32.f32 %v185
    %vm187 = vcmp.gt.s32.totalorder %v178, %v179
    %vm188 = vcmp.lt.s32.totalorder %v178, %v183
    %vm189 = vmand %vm187, %vm188
    %v190 = vsel %vm189, 1, 0
    %v191 = vcvt.s32.f32 %v190
    %vm192 = vcmask 97280
    %v194 = vsel %vm192, %v182, 0
    %vm196 = vcmask 1043456
    %v198 = vsel %vm196, %v53, 0
    %v201 = vsel %vm196, %v54, 0
    %203 = vmatprep.subr.mxu0 0.0
    %204 = vmatpush1.msra.mxu0 0.0
    %205 = vmatprep.subr.mxu0 0.0
    %206 = vmatpush1.msra.mxu0 0.0
    %207 = vmatprep.subr.mxu0 0.0
    %208 = vmatpush1.msra.mxu0 0.0
    %209 = vmatprep.subr.mxu0 0.0
    %210 = vmatpush1.msra.mxu0 0.0
    %211 = vmatprep.subr.mxu0 0.0
    %212 = vmatpush1.msra.mxu0 0.0
    %213 = vmatprep.subr.mxu0 0.0
    %214 = vmatpush1.msra.mxu0 0.0
    %215 = vmatprep.subr.mxu0 0.0
    %216 = vmatpush1.msra.mxu0 0.0
    %217 = vmatprep.subr.mxu0 0.0
    %218 = vmatpush1.msra.mxu0 0.0
    %219 = vmatprep.subr.mxu0 0.0
    %220 = vmatpush1.msra.mxu0 0.0
    %221 = vmatprep.subr.mxu0 0.0
    %222 = vmatpush1.msra.mxu0 0.0
    %223 = vmatprep.subr.mxu0 0.0
    %224 = vmatpush1.msra.mxu0 0.0
    %225 = vmatprep.subr.mxu0 0.0
    %226 = vmatpush1.msra.mxu0 0.0
    %227 = vmatprep.subr.mxu0 0.0
    %228 = vmatpush1.msra.mxu0 0.0
    %229 = vmatprep.subr.mxu0 0.0
    %230 = vmatpush1.msra.mxu0 0.0
    %231 = vmatprep.subr.mxu0 %v201
    %232 = vmatpush1.msra.mxu0 %v198
    %233 = vmatprep.subr.mxu0 %v52
    %234 = vmatpush1.msra.mxu0 %v51
    %235 = vmatprep.subr.mxu0 0.0
    %236 = vmatpush2.msra.mxu0 0.0
    %237 = vmatprep.subr.mxu0 0.0
    %238 = vmatpush2.msra.mxu0 0.0
    %239 = vmatprep.subr.mxu0 0.0
    %240 = vmatpush2.msra.mxu0 0.0
    %241 = vmatprep.subr.mxu0 0.0
    %242 = vmatpush2.msra.mxu0 0.0
    %243 = vmatprep.subr.mxu0 0.0
    %244 = vmatpush2.msra.mxu0 0.0
    %245 = vmatprep.subr.mxu0 0.0
    %246 = vmatpush2.msra.mxu0 0.0
    %247 = vmatprep.subr.mxu0 0.0
    %248 = vmatpush2.msra.mxu0 0.0
    %249 = vmatprep.subr.mxu0 0.0
    %250 = vmatpush2.msra.mxu0 0.0
    %251 = vmatprep.subr.mxu0 0.0
    %252 = vmatpush2.msra.mxu0 0.0
    %253 = vmatprep.subr.mxu0 0.0
    %254 = vmatpush2.msra.mxu0 0.0
    %255 = vmatprep.subr.mxu0 0.0
    %256 = vmatpush2.msra.mxu0 0.0
    %257 = vmatprep.subr.mxu0 0.0
    %258 = vmatpush2.msra.mxu0 0.0
    %259 = vmatprep.subr.mxu0 0.0
    %260 = vmatpush2.msra.mxu0 0.0
    %261 = vmatprep.subr.mxu0 0.0
    %262 = vmatpush2.msra.mxu0 0.0
    %263 = vmatprep.subr.mxu0 0.0
    %264 = vmatpush2.msra.mxu0 0.0
    %265 = vmatprep.subr.mxu0 0.0
    %266 = vmatpush2.msra.mxu0 0.0
    %267 = vmatprep.mubr.f32.mxu0 0.0
    %268 = vmatmul.mubr.f32.gmra.mxu0 %v194
    %v269 = vpop.f32.mrf.mxu0
    %v270 = vadd.f32 0.0, %v269
    %v271 = vpop.f32.mrf.mxu0
    %v272 = vadd.f32 0.0, %v271
    %273 = vdwg.mxu0
    %v275 = vsel %vm196, %v133, 0
    %v278 = vsel %vm196, %v134, 0
    %280 = vmatprep.subr.mxu0 0.0
    %281 = vmatpush1.msra.mxu0 0.0
    %282 = vmatprep.subr.mxu0 0.0
    %283 = vmatpush1.msra.mxu0 0.0
    %284 = vmatprep.subr.mxu0 0.0
    %285 = vmatpush1.msra.mxu0 0.0
    %286 = vmatprep.subr.mxu0 0.0
    %287 = vmatpush1.msra.mxu0 0.0
    %288 = vmatprep.subr.mxu0 0.0
    %289 = vmatpush1.msra.mxu0 0.0
    %290 = vmatprep.subr.mxu0 0.0
    %291 = vmatpush1.msra.mxu0 0.0
    %292 = vmatprep.subr.mxu0 0.0
    %293 = vmatpush1.msra.mxu0 0.0
    %294 = vmatprep.subr.mxu0 0.0
    %295 = vmatpush1.msra.mxu0 0.0
    %296 = vmatprep.subr.mxu0 0.0
    %297 = vmatpush1.msra.mxu0 0.0
    %298 = vmatprep.subr.mxu0 0.0
    %299 = vmatpush1.msra.mxu0 0.0
    %300 = vmatprep.subr.mxu0 0.0
    %301 = vmatpush1.msra.mxu0 0.0
    %302 = vmatprep.subr.mxu0 0.0
    %303 = vmatpush1.msra.mxu0 0.0
    %304 = vmatprep.subr.mxu0 0.0
    %305 = vmatpush1.msra.mxu0 0.0
    %306 = vmatprep.subr.mxu0 0.0
    %307 = vmatpush1.msra.mxu0 0.0
    %308 = vmatprep.subr.mxu0 %v278
    %309 = vmatpush1.msra.mxu0 %v275
    %310 = vmatprep.subr.mxu0 %v132
    %311 = vmatpush1.msra.mxu0 %v131
    %312 = vmatprep.subr.mxu0 0.0
    %313 = vmatpush2.msra.mxu0 0.0
    %314 = vmatprep.subr.mxu0 0.0
    %315 = vmatpush2.msra.mxu0 0.0
    %316 = vmatprep.subr.mxu0 0.0
    %317 = vmatpush2.msra.mxu0 0.0
    %318 = vmatprep.subr.mxu0 0.0
    %319 = vmatpush2.msra.mxu0 0.0
    %320 = vmatprep.subr.mxu0 0.0
    %321 = vmatpush2.msra.mxu0 0.0
    %322 = vmatprep.subr.mxu0 0.0
    %323 = vmatpush2.msra.mxu0 0.0
    %324 = vmatprep.subr.mxu0 0.0
    %325 = vmatpush2.msra.mxu0 0.0
    %326 = vmatprep.subr.mxu0 0.0
    %327 = vmatpush2.msra.mxu0 0.0
    %328 = vmatprep.subr.mxu0 0.0
    %329 = vmatpush2.msra.mxu0 0.0
    %330 = vmatprep.subr.mxu0 0.0
    %331 = vmatpush2.msra.mxu0 0.0
    %332 = vmatprep.subr.mxu0 0.0
    %333 = vmatpush2.msra.mxu0 0.0
    %334 = vmatprep.subr.mxu0 0.0
    %335 = vmatpush2.msra.mxu0 0.0
    %336 = vmatprep.subr.mxu0 0.0
    %337 = vmatpush2.msra.mxu0 0.0
    %338 = vmatprep.subr.mxu0 0.0
    %339 = vmatpush2.msra.mxu0 0.0
    %340 = vmatprep.subr.mxu0 0.0
    %341 = vmatpush2.msra.mxu0 0.0
    %342 = vmatprep.subr.mxu0 0.0
    %343 = vmatpush2.msra.mxu0 0.0
    %344 = vmatprep.mubr.f32.mxu0 0.0
    %345 = vmatmul.mubr.f32.gmra.mxu0 %v194
    %v346 = vpop.f32.mrf.mxu0
    %v347 = vadd.f32 0.0, %v346
    %v348 = vpop.f32.mrf.mxu0
    %v349 = vadd.f32 0.0, %v348
    %350 = vdwg.mxu0
    %v352 = vsel %vm192, %v186, 0
    %354 = vmatprep.subr.mxu0 0.0
    %355 = vmatpush1.msra.mxu0 0.0
    %356 = vmatprep.subr.mxu0 0.0
    %357 = vmatpush1.msra.mxu0 0.0
    %358 = vmatprep.subr.mxu0 0.0
    %359 = vmatpush1.msra.mxu0 0.0
    %360 = vmatprep.subr.mxu0 0.0
    %361 = vmatpush1.msra.mxu0 0.0
    %362 = vmatprep.subr.mxu0 0.0
    %363 = vmatpush1.msra.mxu0 0.0
    %364 = vmatprep.subr.mxu0 0.0
    %365 = vmatpush1.msra.mxu0 0.0
    %366 = vmatprep.subr.mxu0 0.0
    %367 = vmatpush1.msra.mxu0 0.0
    %368 = vmatprep.subr.mxu0 0.0
    %369 = vmatpush1.msra.mxu0 0.0
    %370 = vmatprep.subr.mxu0 0.0
    %371 = vmatpush1.msra.mxu0 0.0
    %372 = vmatprep.subr.mxu0 0.0
    %373 = vmatpush1.msra.mxu0 0.0
    %374 = vmatprep.subr.mxu0 0.0
    %375 = vmatpush1.msra.mxu0 0.0
    %376 = vmatprep.subr.mxu0 0.0
    %377 = vmatpush1.msra.mxu0 0.0
    %378 = vmatprep.subr.mxu0 0.0
    %379 = vmatpush1.msra.mxu0 0.0
    %380 = vmatprep.subr.mxu0 0.0
    %381 = vmatpush1.msra.mxu0 0.0
    %382 = vmatprep.subr.mxu0 %v278
    %383 = vmatpush1.msra.mxu0 %v275
    %384 = vmatprep.subr.mxu0 %v132
    %385 = vmatpush1.msra.mxu0 %v131
    %386 = vmatprep.subr.mxu0 0.0
    %387 = vmatpush2.msra.mxu0 0.0
    %388 = vmatprep.subr.mxu0 0.0
    %389 = vmatpush2.msra.mxu0 0.0
    %390 = vmatprep.subr.mxu0 0.0
    %391 = vmatpush2.msra.mxu0 0.0
    %392 = vmatprep.subr.mxu0 0.0
    %393 = vmatpush2.msra.mxu0 0.0
    %394 = vmatprep.subr.mxu0 0.0
    %395 = vmatpush2.msra.mxu0 0.0
    %396 = vmatprep.subr.mxu0 0.0
    %397 = vmatpush2.msra.mxu0 0.0
    %398 = vmatprep.subr.mxu0 0.0
    %399 = vmatpush2.msra.mxu0 0.0
    %400 = vmatprep.subr.mxu0 0.0
    %401 = vmatpush2.msra.mxu0 0.0
    %402 = vmatprep.subr.mxu0 0.0
    %403 = vmatpush2.msra.mxu0 0.0
    %404 = vmatprep.subr.mxu0 0.0
    %405 = vmatpush2.msra.mxu0 0.0
    %406 = vmatprep.subr.mxu0 0.0
    %407 = vmatpush2.msra.mxu0 0.0
    %408 = vmatprep.subr.mxu0 0.0
    %409 = vmatpush2.msra.mxu0 0.0
    %410 = vmatprep.subr.mxu0 0.0
    %411 = vmatpush2.msra.mxu0 0.0
    %412 = vmatprep.subr.mxu0 0.0
    %413 = vmatpush2.msra.mxu0 0.0
    %414 = vmatprep.subr.mxu0 0.0
    %415 = vmatpush2.msra.mxu0 0.0
    %416 = vmatprep.subr.mxu0 0.0
    %417 = vmatpush2.msra.mxu0 0.0
    %418 = vmatprep.mubr.f32.mxu0 0.0
    %419 = vmatmul.mubr.f32.gmra.mxu0 %v352
    %v420 = vpop.f32.mrf.mxu0
    %v421 = vadd.f32 0.0, %v420
    %v422 = vpop.f32.mrf.mxu0
    %v423 = vadd.f32 0.0, %v422
    %424 = vdwg.mxu0
    %v426 = vsel %vm192, %v191, 0
    %v429 = vsel %vm196, %v173, 0
    %v432 = vsel %vm196, %v174, 0
    %434 = vmatprep.subr.mxu0 0.0
    %435 = vmatpush1.msra.mxu0 0.0
    %436 = vmatprep.subr.mxu0 0.0
    %437 = vmatpush1.msra.mxu0 0.0
    %438 = vmatprep.subr.mxu0 0.0
    %439 = vmatpush1.msra.mxu0 0.0
    %440 = vmatprep.subr.mxu0 0.0
    %441 = vmatpush1.msra.mxu0 0.0
    %442 = vmatprep.subr.mxu0 0.0
    %443 = vmatpush1.msra.mxu0 0.0
    %444 = vmatprep.subr.mxu0 0.0
    %445 = vmatpush1.msra.mxu0 0.0
    %446 = vmatprep.subr.mxu0 0.0
    %447 = vmatpush1.msra.mxu0 0.0
    %448 = vmatprep.subr.mxu0 0.0
    %449 = vmatpush1.msra.mxu0 0.0
    %450 = vmatprep.subr.mxu0 0.0
    %451 = vmatpush1.msra.mxu0 0.0
    %452 = vmatprep.subr.mxu0 0.0
    %453 = vmatpush1.msra.mxu0 0.0
    %454 = vmatprep.subr.mxu0 0.0
    %455 = vmatpush1.msra.mxu0 0.0
    %456 = vmatprep.subr.mxu0 0.0
    %457 = vmatpush1.msra.mxu0 0.0
    %458 = vmatprep.subr.mxu0 0.0
    %459 = vmatpush1.msra.mxu0 0.0
    %460 = vmatprep.subr.mxu0 0.0
    %461 = vmatpush1.msra.mxu0 0.0
    %462 = vmatprep.subr.mxu0 %v432
    %463 = vmatpush1.msra.mxu0 %v429
    %464 = vmatprep.subr.mxu0 %v172
    %465 = vmatpush1.msra.mxu0 %v171
    %466 = vmatprep.subr.mxu0 0.0
    %467 = vmatpush2.msra.mxu0 0.0
    %468 = vmatprep.subr.mxu0 0.0
    %469 = vmatpush2.msra.mxu0 0.0
    %470 = vmatprep.subr.mxu0 0.0
    %471 = vmatpush2.msra.mxu0 0.0
    %472 = vmatprep.subr.mxu0 0.0
    %473 = vmatpush2.msra.mxu0 0.0
    %474 = vmatprep.subr.mxu0 0.0
    %475 = vmatpush2.msra.mxu0 0.0
    %476 = vmatprep.subr.mxu0 0.0
    %477 = vmatpush2.msra.mxu0 0.0
    %478 = vmatprep.subr.mxu0 0.0
    %479 = vmatpush2.msra.mxu0 0.0
    %480 = vmatprep.subr.mxu0 0.0
    %481 = vmatpush2.msra.mxu0 0.0
    %482 = vmatprep.subr.mxu0 0.0
    %483 = vmatpush2.msra.mxu0 0.0
    %484 = vmatprep.subr.mxu0 0.0
    %485 = vmatpush2.msra.mxu0 0.0
    %486 = vmatprep.subr.mxu0 0.0
    %487 = vmatpush2.msra.mxu0 0.0
    %488 = vmatprep.subr.mxu0 0.0
    %489 = vmatpush2.msra.mxu0 0.0
    %490 = vmatprep.subr.mxu0 0.0
    %491 = vmatpush2.msra.mxu0 0.0
    %492 = vmatprep.subr.mxu0 0.0
    %493 = vmatpush2.msra.mxu0 0.0
    %494 = vmatprep.subr.mxu0 0.0
    %495 = vmatpush2.msra.mxu0 0.0
    %496 = vmatprep.subr.mxu0 0.0
    %497 = vmatpush2.msra.mxu0 0.0
    %498 = vmatprep.mubr.f32.mxu0 0.0
    %499 = vmatmul.mubr.f32.gmra.mxu0 %v426
    %v500 = vpop.f32.mrf.mxu0
    %v501 = vadd.f32 0.0, %v500
    %v502 = vpop.f32.mrf.mxu0
    %v503 = vadd.f32 0.0, %v502
    %504 = vdwg.mxu0
    %v505 = vmul.f32 %v347, 9.0
    %v506 = vmul.f32 %v349, 9.0
    %v508 = vsel %vm196, %v129, 0
    %v511 = vsel %vm196, %v130, 0
    %513 = vmatprep.subr.mxu0 0.0
    %514 = vmatpush1.msra.mxu0 0.0
    %515 = vmatprep.subr.mxu0 0.0
    %516 = vmatpush1.msra.mxu0 0.0
    %517 = vmatprep.subr.mxu0 0.0
    %518 = vmatpush1.msra.mxu0 0.0
    %519 = vmatprep.subr.mxu0 0.0
    %520 = vmatpush1.msra.mxu0 0.0
    %521 = vmatprep.subr.mxu0 0.0
    %522 = vmatpush1.msra.mxu0 0.0
    %523 = vmatprep.subr.mxu0 0.0
    %524 = vmatpush1.msra.mxu0 0.0
    %525 = vmatprep.subr.mxu0 0.0
    %526 = vmatpush1.msra.mxu0 0.0
    %527 = vmatprep.subr.mxu0 0.0
    %528 = vmatpush1.msra.mxu0 0.0
    %529 = vmatprep.subr.mxu0 0.0
    %530 = vmatpush1.msra.mxu0 0.0
    %531 = vmatprep.subr.mxu0 0.0
    %532 = vmatpush1.msra.mxu0 0.0
    %533 = vmatprep.subr.mxu0 0.0
    %534 = vmatpush1.msra.mxu0 0.0
    %535 = vmatprep.subr.mxu0 0.0
    %536 = vmatpush1.msra.mxu0 0.0
    %537 = vmatprep.subr.mxu0 0.0
    %538 = vmatpush1.msra.mxu0 0.0
    %539 = vmatprep.subr.mxu0 0.0
    %540 = vmatpush1.msra.mxu0 0.0
    %541 = vmatprep.subr.mxu0 %v511
    %542 = vmatpush1.msra.mxu0 %v508
    %543 = vmatprep.subr.mxu0 %v128
    %544 = vmatpush1.msra.mxu0 %v127
    %545 = vmatprep.subr.mxu0 0.0
    %546 = vmatpush2.msra.mxu0 0.0
    %547 = vmatprep.subr.mxu0 0.0
    %548 = vmatpush2.msra.mxu0 0.0
    %549 = vmatprep.subr.mxu0 0.0
    %550 = vmatpush2.msra.mxu0 0.0
    %551 = vmatprep.subr.mxu0 0.0
    %552 = vmatpush2.msra.mxu0 0.0
    %553 = vmatprep.subr.mxu0 0.0
    %554 = vmatpush2.msra.mxu0 0.0
    %555 = vmatprep.subr.mxu0 0.0
    %556 = vmatpush2.msra.mxu0 0.0
    %557 = vmatprep.subr.mxu0 0.0
    %558 = vmatpush2.msra.mxu0 0.0
    %559 = vmatprep.subr.mxu0 0.0
    %560 = vmatpush2.msra.mxu0 0.0
    %561 = vmatprep.subr.mxu0 0.0
    %562 = vmatpush2.msra.mxu0 0.0
    %563 = vmatprep.subr.mxu0 0.0
    %564 = vmatpush2.msra.mxu0 0.0
    %565 = vmatprep.subr.mxu0 0.0
    %566 = vmatpush2.msra.mxu0 0.0
    %567 = vmatprep.subr.mxu0 0.0
    %568 = vmatpush2.msra.mxu0 0.0
    %569 = vmatprep.subr.mxu0 0.0
    %570 = vmatpush2.msra.mxu0 0.0
    %571 = vmatprep.subr.mxu0 0.0
    %572 = vmatpush2.msra.mxu0 0.0
    %573 = vmatprep.subr.mxu0 0.0
    %574 = vmatpush2.msra.mxu0 0.0
    %575 = vmatprep.subr.mxu0 0.0
    %576 = vmatpush2.msra.mxu0 0.0
    %577 = vmatprep.mubr.f32.mxu0 0.0
    %578 = vmatmul.mubr.f32.gmra.mxu0 %v194
    %v579 = vpop.f32.mrf.mxu0
    %v580 = vadd.f32 %v505, %v579
    %v581 = vpop.f32.mrf.mxu0
    %v582 = vadd.f32 %v506, %v581
    %583 = vdwg.mxu0
    %v584 = vmul.f32 %v421, 0.0
    %v585 = vmul.f32 %v423, 0.0
    %586 = vmatprep.subr.mxu0 0.0
    %587 = vmatpush1.msra.mxu0 0.0
    %588 = vmatprep.subr.mxu0 0.0
    %589 = vmatpush1.msra.mxu0 0.0
    %590 = vmatprep.subr.mxu0 0.0
    %591 = vmatpush1.msra.mxu0 0.0
    %592 = vmatprep.subr.mxu0 0.0
    %593 = vmatpush1.msra.mxu0 0.0
    %594 = vmatprep.subr.mxu0 0.0
    %595 = vmatpush1.msra.mxu0 0.0
    %596 = vmatprep.subr.mxu0 0.0
    %597 = vmatpush1.msra.mxu0 0.0
    %598 = vmatprep.subr.mxu0 0.0
    %599 = vmatpush1.msra.mxu0 0.0
    %600 = vmatprep.subr.mxu0 0.0
    %601 = vmatpush1.msra.mxu0 0.0
    %602 = vmatprep.subr.mxu0 0.0
    %603 = vmatpush1.msra.mxu0 0.0
    %604 = vmatprep.subr.mxu0 0.0
    %605 = vmatpush1.msra.mxu0 0.0
    %606 = vmatprep.subr.mxu0 0.0
    %607 = vmatpush1.msra.mxu0 0.0
    %608 = vmatprep.subr.mxu0 0.0
    %609 = vmatpush1.msra.mxu0 0.0
    %610 = vmatprep.subr.mxu0 0.0
    %611 = vmatpush1.msra.mxu0 0.0
    %612 = vmatprep.subr.mxu0 0.0
    %613 = vmatpush1.msra.mxu0 0.0
    %614 = vmatprep.subr.mxu0 %v511
    %615 = vmatpush1.msra.mxu0 %v508
    %616 = vmatprep.subr.mxu0 %v128
    %617 = vmatpush1.msra.mxu0 %v127
    %618 = vmatprep.subr.mxu0 0.0
    %619 = vmatpush2.msra.mxu0 0.0
    %620 = vmatprep.subr.mxu0 0.0
    %621 = vmatpush2.msra.mxu0 0.0
    %622 = vmatprep.subr.mxu0 0.0
    %623 = vmatpush2.msra.mxu0 0.0
    %624 = vmatprep.subr.mxu0 0.0
    %625 = vmatpush2.msra.mxu0 0.0
    %626 = vmatprep.subr.mxu0 0.0
    %627 = vmatpush2.msra.mxu0 0.0
    %628 = vmatprep.subr.mxu0 0.0
    %629 = vmatpush2.msra.mxu0 0.0
    %630 = vmatprep.subr.mxu0 0.0
    %631 = vmatpush2.msra.mxu0 0.0
    %632 = vmatprep.subr.mxu0 0.0
    %633 = vmatpush2.msra.mxu0 0.0
    %634 = vmatprep.subr.mxu0 0.0
    %635 = vmatpush2.msra.mxu0 0.0
    %636 = vmatprep.subr.mxu0 0.0
    %637 = vmatpush2.msra.mxu0 0.0
    %638 = vmatprep.subr.mxu0 0.0
    %639 = vmatpush2.msra.mxu0 0.0
    %640 = vmatprep.subr.mxu0 0.0
    %641 = vmatpush2.msra.mxu0 0.0
    %642 = vmatprep.subr.mxu0 0.0
    %643 = vmatpush2.msra.mxu0 0.0
    %644 = vmatprep.subr.mxu0 0.0
    %645 = vmatpush2.msra.mxu0 0.0
    %646 = vmatprep.subr.mxu0 0.0
    %647 = vmatpush2.msra.mxu0 0.0
    %648 = vmatprep.subr.mxu0 0.0
    %649 = vmatpush2.msra.mxu0 0.0
    %650 = vmatprep.mubr.f32.mxu0 0.0
    %651 = vmatmul.mubr.f32.gmra.mxu0 %v352
    %v652 = vpop.f32.mrf.mxu0
    %v653 = vadd.f32 %v584, %v652
    %v654 = vpop.f32.mrf.mxu0
    %v655 = vadd.f32 %v585, %v654
    %656 = vdwg.mxu0
    %vm657 = vcmp.gt.f32.partialorder %v270, 0.0
    %vm658 = vcmp.gt.f32.partialorder %v272, 0.0
    %v659 = vsel %vm657, 1, 0
    %v660 = vsel %vm658, 1, 0
    %v661 = vcvt.s32.f32 %v659
    %v662 = vcvt.s32.f32 %v660
    %vm663 = vcmask 1041408
    %v664 = vsel %vm663, %v580, 0.0
    %v665 = vsel %vm663, %v582, 0.0
    %v666 = vadd.f32 %v664, %v665
    %667 = vadd.xlane.f32.xlu0 %v666
    %v668 = vpop.xlane.xlu0 %667
    %v669 = vrot.slane %v668, 4
    %v670 = vadd.f32 %v668, %v669
    %v671 = vrot.slane %v670, 2
    %v672 = vadd.f32 %v670, %v671
    %v673 = vrot.slane %v672, 1
    %v674 = vadd.f32 %v672, %v673
    %s675 = vtos %v674
    %v676 = vsel %vm663, %v661, 0.0
    %v677 = vsel %vm663, %v662, 0.0
    %v678 = vadd.f32 %v676, %v677
    %679 = vadd.xlane.f32.xlu0 %v678
    %v680 = vpop.xlane.xlu0 %679
    %v681 = vrot.slane %v680, 4
    %v682 = vadd.f32 %v680, %v681
    %v683 = vrot.slane %v682, 2
    %v684 = vadd.f32 %v682, %v683
    %v685 = vrot.slane %v684, 1
    %v686 = vadd.f32 %v684, %v685
    %s687 = vtos %v686
    %v688 = vsel %vm657, %v501, 0.0
    %v689 = vsel %vm658, %v503, 0.0
    %v690 = vsel %vm663, %v688, 0.0
    %v691 = vsel %vm663, %v689, 0.0
    %v692 = vadd.f32 %v690, %v691
    %693 = vadd.xlane.f32.xlu0 %v692
    %v694 = vpop.xlane.xlu0 %693
    %v695 = vrot.slane %v694, 4
    %v696 = vadd.f32 %v694, %v695
    %v697 = vrot.slane %v696, 2
    %v698 = vadd.f32 %v696, %v697
    %v699 = vrot.slane %v698, 1
    %v700 = vadd.f32 %v698, %v699
    %s701 = vtos %v700
    %v702 = vsel %vm657, %v653, 0.0
    %v703 = vsel %vm658, %v655, 0.0
    %v704 = vsel %vm663, %v702, 0.0
    %v705 = vsel %vm663, %v703, 0.0
    %v706 = vadd.f32 %v704, %v705
    %707 = vadd.xlane.f32.xlu0 %v706
    %v708 = vpop.xlane.xlu0 %707
    %v709 = vrot.slane %v708, 4
    %v710 = vadd.f32 %v708, %v709
    %v711 = vrot.slane %v710, 2
    %v712 = vadd.f32 %v710, %v711
    %v713 = vrot.slane %v712, 1
    %v714 = vadd.f32 %v712, %v713
    %s715 = vtos %v714
    %vm716 = vcmp.eq.s32.totalorder %v178, 0
    %v717 = vstv %s675
    %v718 = vsel %vm716, %v717, 0.0
    %vm719 = vcmp.eq.s32.totalorder %v178, 1
    %v720 = vstv %s687
    %v721 = vsel %vm719, %v720, 0.0
    %v722 = vadd.f32 %v718, %v721
    %vm723 = vcmp.eq.s32.totalorder %v178, 2
    %v724 = vstv %s701
    %v725 = vsel %vm723, %v724, 0.0
    %v726 = vadd.f32 %v722, %v725
    %vm727 = vcmp.eq.s32.totalorder %v178, 3
    %v728 = vstv %s715
    %v729 = vsel %vm727, %v728, 0.0
    %v730 = vadd.f32 %v726, %v729
    %v731 = vld [vmem:[#allocation7] sm:$0xff]
    %v732 = vadd.f32 %v731, %v730
    %733 = vst [vmem:[#allocation7] sm:$0xff] %v732
    // Predicated region
    $region22: #{tpu_custom_call.1} parent=1 // pred_check
      _
    $region23: #{tpu_custom_call.1} parent=1 // pred_check_branch
      %735 = sbr.rel (0) target = $region25
    $region24: #{tpu_custom_call.1} parent=1 // pred_region
      %s737 = ssub.s32 128, 128
      %738 = vsyncadd [#allocation4], %s737
      %s740 = sshll.u32 [#allocation7], 4
      %s741 = int_to_ptr.vmem [resolvable:$true] %s740
      %743 = dma.vmem_to_hbm [thread:$0]  %s741, 128, %s2, [#allocation4]
    $region25: #{tpu_custom_call.1} parent=1 // pred_fallthru
      _
    // Predicated region
    $region26: #{tpu_custom_call.1} parent=1 // pred_check
      _
    $region27: #{tpu_custom_call.1} parent=1 // pred_check_branch
      %745 = sbr.rel (0) target = $region29
    $region28: #{tpu_custom_call.1} parent=1 // pred_region
      %746 = dma.done [#allocation4], 128
    $region29: #{tpu_custom_call.1} parent=1 // pred_fallthru
      _
    %747 = vsyncpa [#allocation3], 1
    %748 = vsyncpa [#allocation6], 1
    %749 = vsyncpa [#allocation4], 1

</llo_original>
